<compile_context>
chip_gen: v7x
topology: tpu7x:2x2x1
jax: 0.10.0
libtpu: 0.0.40
codegen_flags: <defaults>
</compile_context>

<pallas_src>
import functools

import jax
import jax.numpy as jnp
from jax import lax
from jax.experimental import pallas as pl
from jax.experimental.pallas import tpu as pltpu


# ----------------------------------------------------------------------------
# sizing helpers (generation-aware)
# ----------------------------------------------------------------------------
def _round_up(x, m):
    return ((x + m - 1) // m) * m


def _vmem_budget_bytes():
    """Per-core scoped-VMEM budget, derived from hardware when queryable.
    128 MiB physical (v5e/v6e) -> 96 MiB budget; 64 MiB (v7x) -> 48 MiB."""
    try:
        cap = int(pltpu.get_tpu_info().vmem_capacity_bytes)
    except Exception:
        cap = 64 << 20  # conservative: assume v7x-sized VMEM
    return max(16 << 20, min(cap - (16 << 20), (cap * 3) // 4))


def _choose_tk(m, k_pad, itemsize, tile_budget_bytes, max_tk=None):
    """k_pad is a multiple of 128.  Returns the largest 128-aligned divisor of
    k_pad (512-aligned preferred, for the 2x256 MXUs on v6e/v7x) whose
    double-buffered (m, tk) streamed feature tile fits tile_budget_bytes."""
    hi = k_pad
    if max_tk is not None:
        hi = min(hi, max(128, (max_tk // 128) * 128))
    by_budget = (tile_budget_bytes // (2 * m * itemsize)) // 128 * 128
    hi = max(128, min(hi, by_budget))
    for step in (512, 128):
        tk = (hi // step) * step
        while tk >= step:
            if k_pad % tk == 0:
                return tk
            tk -= step
    return 128  # unreachable: 128 always divides k_pad


def _vmem_limit(footprint_bytes, budget_bytes):
    return int(min(max(footprint_bytes, 16 << 20), budget_bytes))


def _prep_features(x):
    """(n, c, h, w) -> lane-padded (M, K_pad) feature matrix (native dtype)."""
    n, c, h, w = x.shape
    m, k = n * c, h * w
    feats = x.reshape(m, k)  # row-major, matches torch.reshape
    k_pad = _round_up(k, 128)
    if k_pad != k:
        # zero columns don't change F @ F.T; keeps the tiled lane-aligned path
        feats = jnp.pad(feats, ((0, 0), (0, k_pad - k)))
    return feats, m, k_pad


# ----------------------------------------------------------------------------
# gram kernel:  G = (F @ F.T) / (n*c*h*w)     F: (M, K), K-tiled reduction grid
# ----------------------------------------------------------------------------
def _gram_kernel(f_ref, g_ref, *, inv_scale, compute_dtype):
    kstep = pl.program_id(0)

    @pl.when(kstep == 0)
    def _():
        g_ref[...] = jnp.zeros_like(g_ref)

    # in-VMEM cast (f32 streamed from HBM, bf16 fed to the MXU)
    f = f_ref[...].astype(compute_dtype)                # (M, tk)
    # contract both operands on K: F @ F.T without forming F.T
    g_ref[...] += lax.dot_general(
        f, f, dimension_numbers=(((1,), (1,)), ((), ())),
        preferred_element_type=jnp.float32)

    @pl.when(kstep == pl.num_programs(0) - 1)
    def _():
        g_ref[...] = g_ref[...] * inv_scale


def gram_pallas(x, *, compute_dtype=jnp.bfloat16, max_tk=None):
    """x: (n, c, h, w) -> scaled gram matrix (n*c, n*c) float32."""
    n, c, h, w = x.shape
    feats, m, k_pad = _prep_features(x)
    itemsize = jnp.dtype(feats.dtype).itemsize
    budget = _vmem_budget_bytes()

    resident = 2 * m * m * 4                      # resident f32 gram output
    if resident + 2 * m * 128 * itemsize + (2 << 20) > budget:
        # TODO(synk): M-tiled output path for very large n*c.
        raise ValueError(f"n*c={m} too large for a VMEM-resident gram")

    tk = _choose_tk(m, k_pad, itemsize, budget - resident - (2 << 20), max_tk)
    vmem = _vmem_limit(2 * m * tk * itemsize + resident + (2 << 20), budget)

    kernel = functools.partial(_gram_kernel,
                               inv_scale=1.0 / float(n * c * h * w),
                               compute_dtype=compute_dtype)
    return pl.pallas_call(
        kernel,
        grid=(k_pad // tk,),
        in_specs=[pl.BlockSpec((m, tk), lambda i: (0, i))],
        out_specs=pl.BlockSpec((m, m), lambda i: (0, 0)),
        out_shape=jax.ShapeDtypeStruct((m, m), jnp.float32),
        compiler_params=pltpu.CompilerParams(
            dimension_semantics=("arbitrary",),
            vmem_limit_bytes=vmem),
    )(feats)


# ----------------------------------------------------------------------------
# fused forward kernel:
#   accumulate unscaled G = F @ F.T over K tiles, then on the last K step:
#   loss = 1 - sum_g cos( G.view(c,-1)[g], T.view(c,-1)[g] ) / c
# View row g of an (M, M) matrix = its rows [g*n, (g+1)*n) flattened, so the
# per-view-row dot products / squared norms are segment sums of per-gram-row
# reductions (broadcasted-iota mask; no reshape, no selector matmul).
# ----------------------------------------------------------------------------
def _style_loss_kernel(f_ref, t_ref, tnorm_ref, loss_ref, acc_ref,
                       *, n, c, inv_scale, eps, compute_dtype):
    kstep = pl.program_id(0)

    @pl.when(kstep == 0)
    def _():
        acc_ref[...] = jnp.zeros_like(acc_ref)

    f = f_ref[...].astype(compute_dtype)               # (M, tk), cast in VMEM
    acc_ref[...] += lax.dot_general(                   # unscaled gram accum
        f, f, dimension_numbers=(((1,), (1,)), ((), ())),
        preferred_element_type=jnp.float32)

    @pl.when(kstep == pl.num_programs(0) - 1)
    def _():
        G = acc_ref[...]                               # (M, M) unscaled, f32
        T = t_ref[...]                                 # (M, M) scaled target
        m = G.shape[0]

        # per-gram-row reductions
        dot_rows = jnp.sum(G * T, axis=1, keepdims=True)   # (M, 1)
        gg_rows = jnp.sum(G * G, axis=1, keepdims=True)    # (M, 1)

        # segment-sum rows [g*n, (g+1)*n) -> view row g, via iota mask
        rid = lax.broadcasted_iota(jnp.int32, (m, c), 0)
        gid = lax.broadcasted_iota(jnp.int32, (m, c), 1)
        mask = ((rid >= gid * n) & (rid < (gid + 1) * n)).astype(jnp.float32)
        dots = jnp.sum(dot_rows * mask, axis=0, keepdims=True)   # (1, c)
        gg = jnp.sum(gg_rows * mask, axis=0, keepdims=True)      # (1, c)

        # cosine is invariant to a uniform scale of G; rescale only the tiny
        # (1, c) results so the eps clamp sees the same magnitudes as the
        # original scaled-gram formulation.
        g_norm = jnp.sqrt(gg) * inv_scale
        t_norm = tnorm_ref[...]                                  # (1, c), f32
        # NOTE: clamps each norm separately (matches current torch
        # cosine_similarity); only differs for degenerate near-zero rows.
        cos = (dots * inv_scale) / (
            jnp.maximum(g_norm, eps) * jnp.maximum(t_norm, eps))
        total = jnp.sum(cos, axis=1, keepdims=True)              # (1, 1)
        loss_ref[...] = 1.0 - total * (1.0 / c)


def init_style_loss(target, *, compute_dtype=jnp.bfloat16):
    """StyleLoss.__init__: precompute target gram + per-view-row norms."""
    _, c, _, _ = target.shape
    target_gram = gram_pallas(target, compute_dtype=compute_dtype)  # (M, M) f32
    tv = target_gram.reshape(c, -1)
    t_norm = jnp.sqrt(jnp.sum(tv * tv, axis=1)).reshape(1, c)       # (1, c) f32
    return target_gram, t_norm


def style_loss_forward(x, target_gram, t_norm, *,
                       compute_dtype=jnp.bfloat16, max_tk=None):
    """Equivalent of StyleLoss.forward: returns (input, loss)."""
    n, c, h, w = x.shape
    feats, m, k_pad = _prep_features(x)
    itemsize = jnp.dtype(feats.dtype).itemsize
    budget = _vmem_budget_bytes()

    resident = (2 * m * m * 4      # resident target gram (double-buffered)
                + m * m * 4)       # f32 gram accumulator scratch
    if resident + 2 * m * 128 * itemsize + (2 << 20) > budget:
        # TODO(synk): M-tiled output path for very large n*c.
        raise ValueError(f"n*c={m} too large for a VMEM-resident gram")

    tk = _choose_tk(m, k_pad, itemsize, budget - resident - (2 << 20), max_tk)
    vmem = _vmem_limit(2 * m * tk * itemsize + resident + (2 << 20), budget)

    kernel = functools.partial(
        _style_loss_kernel,
        n=n, c=c,
        inv_scale=1.0 / float(n * c * h * w),
        eps=1e-8,  # torch.cosine_similarity default eps
        compute_dtype=compute_dtype)
    loss = pl.pallas_call(
        kernel,
        grid=(k_pad // tk,),
        in_specs=[
            pl.BlockSpec((m, tk), lambda i: (0, i)),
            pl.BlockSpec((m, m), lambda i: (0, 0)),
            pl.BlockSpec((1, c), lambda i: (0, 0)),
        ],
        out_specs=pl.BlockSpec((1, 1), lambda i: (0, 0)),
        out_shape=jax.ShapeDtypeStruct((1, 1), jnp.float32),
        scratch_shapes=[pltpu.VMEM((m, m), jnp.float32)],
        compiler_params=pltpu.CompilerParams(
            dimension_semantics=("arbitrary",),
            vmem_limit_bytes=vmem),
    )(feats, target_gram.astype(jnp.float32), t_norm.astype(jnp.float32))
    # StyleLoss.forward returns its input unchanged; loss is a side value.
    return x, loss[0, 0]


# ----------------------------------------------------------------------------
# plain-JAX f32 reference (mirrors the PyTorch code exactly) for sanity checks
# ----------------------------------------------------------------------------
def _gram_ref(x):
    n, c, h, w = x.shape
    f = x.reshape(n * c, h * w)
    return (f @ f.T) / n / c / h / w


def _loss_ref(x, target_gram):
    c = x.shape[1]
    G = _gram_ref(x).reshape(c, -1)
    T = target_gram.reshape(c, -1)
    eps = 1e-8
    dot = jnp.sum(G * T, axis=1)
    gn = jnp.maximum(jnp.sqrt(jnp.sum(G * G, axis=1)), eps)
    tn = jnp.maximum(jnp.sqrt(jnp.sum(T * T, axis=1)), eps)
    cos = dot / (gn * tn)
    return 1.0 - jnp.sum(cos) / c


if __name__ == "__main__":
    key = jax.random.PRNGKey(0)
    k_tgt, k_inp, k_t2, k_x2 = jax.random.split(key, 4)

    # primary shape (lane-aligned K = h*w = 256)
    n, c, h, w = 2, 4, 16, 16
    target = jax.random.normal(k_tgt, (n, c, h, w), dtype=jnp.float32)
    x = jax.random.normal(k_inp, (n, c, h, w), dtype=jnp.float32)

    # __init__: precompute target gram (Pallas) + per-view-row norms.
    target_gram, t_norm = init_style_loss(target)

    # forward: single fused Pallas call (input returned unchanged).
    out, loss = style_loss_forward(x, target_gram, t_norm)
    out = jax.block_until_ready(out)
    loss = jax.block_until_ready(loss)

    loss_ref = _loss_ref(x, _gram_ref(target))
    assert jnp.allclose(out, x), "forward must return its input unchanged"
    # bf16 MXU inputs (f32 accumulation) => relaxed tolerance vs f32 ref
    assert jnp.allclose(loss, loss_ref, rtol=2e-2, atol=2e-3), (loss, loss_ref)

    # Force the K axis to tile (exercises the multi-step gram-accumulation
    # path); must agree with the single-step run.
    _, loss_tiled = style_loss_forward(x, target_gram, t_norm, max_tk=128)
    loss_tiled = jax.block_until_ready(loss_tiled)
    assert jnp.allclose(loss_tiled, loss, rtol=1e-4, atol=1e-5), (loss_tiled, loss)

    # Full-f32 validation path (no bf16 cast inside the kernel).
    tg32, tn32 = init_style_loss(target, compute_dtype=jnp.float32)
    _, loss32 = style_loss_forward(x, tg32, tn32, compute_dtype=jnp.float32)
    loss32 = jax.block_until_ready(loss32)
    assert jnp.allclose(loss32, loss_ref, rtol=5e-3, atol=5e-4), (loss32, loss_ref)

    # Robustness: K = h*w = 100 is not lane-aligned -> wrapper zero-pads to 128
    # (previously this fell back to a single unpipelined full-K block).
    n2, c2, h2, w2 = 2, 4, 10, 10
    t2 = jax.random.normal(k_t2, (n2, c2, h2, w2), dtype=jnp.float32)
    x2 = jax.random.normal(k_x2, (n2, c2, h2, w2), dtype=jnp.float32)
    tg2, tn2 = init_style_loss(t2)
    _, loss2 = style_loss_forward(x2, tg2, tn2)
    loss2 = jax.block_until_ready(loss2)
    loss2_ref = _loss_ref(x2, _gram_ref(t2))
    assert jnp.allclose(loss2, loss2_ref, rtol=2e-2, atol=2e-3), (loss2, loss2_ref)

    print("KERNEL_OK")
</pallas_src>

<mosaic_0001>
module attributes {stable_mosaic.version = 11 : i64} {
  func.func @_gram_kernel(%arg0: i32, %arg1: memref<8x256xf32, #tpu.memory_space<vmem>>, %arg2: memref<8x8xf32, #tpu.memory_space<vmem>>) attributes {dimension_semantics = [#tpu.dimension_semantics<arbitrary>], iteration_bounds = array<i64: 1>, scalar_prefetch = 0 : i64, scratch_operands = 0 : i64, tpu.core_type = #tpu.core_type<tc>, window_params = [{transform_indices = @transform_0, window_bounds = array<i64: 8, 256>}, {pipeline_mode = #tpu.pipeline_mode<synchronous>, transform_indices = @transform_1, window_bounds = array<i64: 8, 8>}]} {
    %c0_i32 = arith.constant 0 : i32
    %0 = arith.cmpi eq, %arg0, %c0_i32 : i32
    %1 = arith.extui %0 : i1 to i32
    %c0_i32_0 = arith.constant 0 : i32
    %2 = arith.cmpi ne, %1, %c0_i32_0 : i32
    scf.if %2 {
      %cst_8 = arith.constant 0.000000e+00 : f32
      %12 = vector.broadcast %cst_8 : f32 to vector<8x8xf32>
      %c0_9 = arith.constant 0 : index
      %c0_10 = arith.constant 0 : index
      %13 = vector.load %arg2[%c0_9, %c0_10] : memref<8x8xf32, #tpu.memory_space<vmem>>, vector<8x8xf32>
      tpu.vector_store %arg2[%c0_9, %c0_10], %12 {strides = array<i32>} : memref<8x8xf32, #tpu.memory_space<vmem>>, vector<8x8xf32>,
    } else {
    }
    %c0 = arith.constant 0 : index
    %c0_1 = arith.constant 0 : index
    %3 = vector.load %arg1[%c0, %c0_1] : memref<8x256xf32, #tpu.memory_space<vmem>>, vector<8x256xf32>
    %4 = arith.truncf %3 : vector<8x256xf32> to vector<8x256xbf16>
    %c0_2 = arith.constant 0 : index
    %c0_3 = arith.constant 0 : index
    %5 = vector.load %arg2[%c0_2, %c0_3] : memref<8x8xf32, #tpu.memory_space<vmem>>, vector<8x8xf32>
    %cst = arith.constant dense<0.000000e+00> : vector<8x8xf32>
    %6 = tpu.matmul %4, %4, %cst {dimension_numbers = #tpu.dot_dimension_numbers<[1], [1], [0], [0], [0, 0, 1, 0], [], []>} : vector<8x256xbf16>, vector<8x256xbf16>, vector<8x8xf32> -> vector<8x8xf32>
    %7 = arith.addf %5, %6 : vector<8x8xf32>
    %c0_4 = arith.constant 0 : index
    %c0_5 = arith.constant 0 : index
    %8 = vector.load %arg2[%c0_4, %c0_5] : memref<8x8xf32, #tpu.memory_space<vmem>>, vector<8x8xf32>
    tpu.vector_store %arg2[%c0_4, %c0_5], %7 {strides = array<i32>} : memref<8x8xf32, #tpu.memory_space<vmem>>, vector<8x8xf32>,
    %c0_i32_6 = arith.constant 0 : i32
    %9 = arith.cmpi eq, %arg0, %c0_i32_6 : i32
    %10 = arith.extui %9 : i1 to i32
    %c0_i32_7 = arith.constant 0 : i32
    %11 = arith.cmpi ne, %10, %c0_i32_7 : i32
    scf.if %11 {
      %c0_8 = arith.constant 0 : index
      %c0_9 = arith.constant 0 : index
      %12 = vector.load %arg2[%c0_8, %c0_9] : memref<8x8xf32, #tpu.memory_space<vmem>>, vector<8x8xf32>
      %cst_10 = arith.constant 4.8828125E-4 : f32
      %13 = vector.broadcast %cst_10 : f32 to vector<8x8xf32>
      %14 = arith.mulf %12, %13 : vector<8x8xf32>
      %c0_11 = arith.constant 0 : index
      %c0_12 = arith.constant 0 : index
      %15 = vector.load %arg2[%c0_11, %c0_12] : memref<8x8xf32, #tpu.memory_space<vmem>>, vector<8x8xf32>
      tpu.vector_store %arg2[%c0_11, %c0_12], %14 {strides = array<i32>} : memref<8x8xf32, #tpu.memory_space<vmem>>, vector<8x8xf32>,
    } else {
    }
    return
  }
  func.func @transform_0(%arg0: i32) -> (i32, i32) {
    %c0_i32 = arith.constant 0 : i32
    %c0_i32_0 = arith.constant 0 : i32
    return %c0_i32, %arg0 : i32, i32
  }
  func.func @transform_1(%arg0: i32) -> (i32, i32) {
    %c0_i32 = arith.constant 0 : i32
    %c0_i32_0 = arith.constant 0 : i32
    %c0_i32_1 = arith.constant 0 : i32
    return %c0_i32, %c0_i32_0 : i32, i32
  }
}

</mosaic_0001>

<llo_original>
// kernel: tpu_custom_call.1
$region0: #{tpu_custom_call.1}
  #allocation0 [shape = 'u32[]', space=smem, size = 0x4, offset = 0x4, fixed_abs, tag = 'smem constant byte address 0x4 - core index']
  #allocation1 [shape = 'u32[144,128]{1,0:T(1,128)}', space=vmem, size = 0x12000, scoped, tag = 'internal scratch']
  %s0 = inlined_call_operand.hbm [shape: f32[8,256], index: 0, kind: input, shape index: {}]
  %s1 = inlined_call_operand.hbm [shape: f32[8,8], index: 1, kind: output, shape index: {}]
  %s2 = sld [smem:[#allocation0]]
  $region26: #{tpu_custom_call.1} parent=0
    _
  %s4 = ssub.s32 1, %s2
  %s5 = scalar_select 0, %s4, %s2
  $region1: #{tpu_custom_call.1} parent=0
    #allocation2 [shape = 'u8[8192]{0}', space=vmem, size = 0x2000, scoped, tag = 'input window, operand 0, single buffered']
    #allocation3 [shape = 's32[1]{0}', space=sflag, size = 0x4, scoped, tag = 'scoped memory for tpu_custom_call.1']
    #allocation4 [shape = 's32[1]{0}', space=sflag, size = 0x4, scoped, tag = 'scoped memory for tpu_custom_call.1']
    #allocation5 [shape = 'u8[4096]{0}', space=vmem, size = 0x1000, scoped, tag = 'output window, operand 0, single buffered']
    %6 = vsyncpa [#allocation3], 0
    %7 = vsyncpa [#allocation4], 0
    // Predicated region
    $region2: #{tpu_custom_call.1} parent=1 // pred_check
      _
    $region3: #{tpu_custom_call.1} parent=1 // pred_check_branch
      %9 = sbr.rel (0) target = $region5
    $region4: #{tpu_custom_call.1} parent=1 // pred_region
      %s11 = ssub.s32 256, 256
      %12 = vsyncadd [#allocation3], %s11
      %s14 = sshll.u32 [#allocation2], 4
      %s15 = int_to_ptr.vmem [resolvable:$true] %s14
      %17 = dma.hbm_to_vmem [thread:$0]  %s0, 256, %s15, [#allocation3]
    $region5: #{tpu_custom_call.1} parent=1 // pred_fallthru
      _
    // Predicated region
    $region6: #{tpu_custom_call.1} parent=1 // pred_check
      _
    $region7: #{tpu_custom_call.1} parent=1 // pred_check_branch
      %19 = sbr.rel (0) target = $region9
    $region8: #{tpu_custom_call.1} parent=1 // pred_region
      %20 = dma.done [#allocation3], 256
    $region9: #{tpu_custom_call.1} parent=1 // pred_fallthru
      _
    %p22 = scmp.eq.s32.totalorder 0, 0
    // Predicated region
    $region10: #{tpu_custom_call.1} parent=1 // pred_check
      %p23 = pneg %p22
    $region11: #{tpu_custom_call.1} parent=1 // pred_check_branch
      %25 = sbr.rel (%p23) target = $region13
    $region12: #{tpu_custom_call.1} parent=1 // pred_region
      %vm26 = vcmask 64512
      %27 = vst.msk [vmem:[#allocation5] sm:$0xff] %vm26, 0.0
    $region13: #{tpu_custom_call.1} parent=1 // pred_fallthru
      _
    %v28 = vld [vmem:[#allocation2] sm:$0xff]
    %v29 = vld [vmem:[#allocation2 + $0x8] sm:$0xff]
    %v30 = vpack.c.bf16 %v28, %v28
    %v31 = vpack.c.bf16 %v29, %v29
    %v32 = vld [vmem:[#allocation5] sm:$0xff]
    %33 = vmatprep.subr.bf16.mxu0 %v31
    %34 = vmatpush1.bf16.xpose.msra.mxu0 %v30
    %35 = vmatprep.subr.bf16.mxu0 0
    %36 = vmatpush1.bf16.xpose.msra.mxu0 0
    %37 = vmatprep.subr.bf16.mxu0 0
    %38 = vmatpush1.bf16.xpose.msra.mxu0 0
    %39 = vmatprep.subr.bf16.mxu0 0
    %40 = vmatpush1.bf16.xpose.msra.mxu0 0
    %41 = vmatprep.subr.bf16.mxu0 0
    %42 = vmatpush1.bf16.xpose.msra.mxu0 0
    %43 = vmatprep.subr.bf16.mxu0 0
    %44 = vmatpush1.bf16.xpose.msra.mxu0 0
    %45 = vmatprep.subr.bf16.mxu0 0
    %46 = vmatpush1.bf16.xpose.msra.mxu0 0
    %47 = vmatprep.subr.bf16.mxu0 0
    %48 = vmatpush1.bf16.xpose.msra.mxu0 0
    %49 = vmatprep.subr.bf16.mxu0 0
    %50 = vmatpush1.bf16.xpose.msra.mxu0 0
    %51 = vmatprep.subr.bf16.mxu0 0
    %52 = vmatpush1.bf16.xpose.msra.mxu0 0
    %53 = vmatprep.subr.bf16.mxu0 0
    %54 = vmatpush1.bf16.xpose.msra.mxu0 0
    %55 = vmatprep.subr.bf16.mxu0 0
    %56 = vmatpush1.bf16.xpose.msra.mxu0 0
    %57 = vmatprep.subr.bf16.mxu0 0
    %58 = vmatpush1.bf16.xpose.msra.mxu0 0
    %59 = vmatprep.subr.bf16.mxu0 0
    %60 = vmatpush1.bf16.xpose.msra.mxu0 0
    %61 = vmatprep.subr.bf16.mxu0 0
    %62 = vmatpush1.bf16.xpose.msra.mxu0 0
    %63 = vmatprep.subr.bf16.mxu0 0
    %64 = vmatpush1.bf16.xpose.msra.mxu0 0
    %65 = vmatprep.mubr.bf16.mxu0 %v31
    %66 = vmatmul.mubr.bf16.gmra.mrb[0].mxu0 %v30
    %v67 = vpop.f32.mrb[0].mxu0
    %v68 = vadd.f32 0.0, %v67
    %v69 = vpop.f32.mrb[0].mxu0
    %v70 = vpop.f32.mrb[0].mxu0
    %v71 = vpop.f32.mrb[0].mxu0
    %72 = vdwg.mxu0
    %v73 = vadd.f32 %v32, %v68
    %vm74 = vcmask 64512
    %75 = vst.msk [vmem:[#allocation5] sm:$0xff] %vm74, %v73
    // Predicated region
    $region14: #{tpu_custom_call.1} parent=1 // pred_check
      %p76 = pneg %p22
    $region15: #{tpu_custom_call.1} parent=1 // pred_check_branch
      %78 = sbr.rel (%p76) target = $region17
    $region16: #{tpu_custom_call.1} parent=1 // pred_region
      %v79 = vld [vmem:[#allocation5] sm:$0xff]
      %v80 = vmul.f32 %v79, 0.00048828125
      %81 = vst.msk [vmem:[#allocation5] sm:$0xff] %vm74, %v80
    $region17: #{tpu_custom_call.1} parent=1 // pred_fallthru
      _
    // Predicated region
    $region18: #{tpu_custom_call.1} parent=1 // pred_check
      _
    $region19: #{tpu_custom_call.1} parent=1 // pred_check_branch
      %83 = sbr.rel (0) target = $region21
    $region20: #{tpu_custom_call.1} parent=1 // pred_region
      %s85 = ssub.s32 128, 128
      %86 = vsyncadd [#allocation4], %s85
      %s88 = sshll.u32 [#allocation5], 4
      %s89 = int_to_ptr.vmem [resolvable:$true] %s88
      %91 = dma.vmem_to_hbm [thread:$0]  %s89, 128, %s1, [#allocation4]
    $region21: #{tpu_custom_call.1} parent=1 // pred_fallthru
      _
    // Predicated region
    $region22: #{tpu_custom_call.1} parent=1 // pred_check
      _
    $region23: #{tpu_custom_call.1} parent=1 // pred_check_branch
      %93 = sbr.rel (0) target = $region25
    $region24: #{tpu_custom_call.1} parent=1 // pred_region
      %94 = dma.done [#allocation4], 128
    $region25: #{tpu_custom_call.1} parent=1 // pred_fallthru
      _
    %95 = vsyncpa [#allocation3], 1
    %96 = vsyncpa [#allocation4], 1

</llo_original>
